<compile_context>
chip_gen: v6e
topology: v6e:2x2x1
jax: 0.10.0
libtpu: 0.0.40
codegen_flags: <defaults>
</compile_context>

<pallas_src>
import functools

import jax
import jax.numpy as jnp
from jax.experimental import pallas as pl
from jax.experimental.pallas import tpu as pltpu


# ---------------------------------------------------------------------------
# Kernel
# ---------------------------------------------------------------------------
def _cond_noise_mlp_kernel(*refs, use_noise: bool, compute_dtype):
    if use_noise:
        (x_ref, n1_ref, n2_ref, n3_ref,
         w1_ref, b1_ref, w2_ref, b2_ref, w3_ref, b3_ref,
         wo_ref, bo_ref, out_ref) = refs
        noise_refs = (n1_ref, n2_ref, n3_ref)
    else:
        (x_ref,
         w1_ref, b1_ref, w2_ref, b2_ref, w3_ref, b3_ref,
         wo_ref, bo_ref, out_ref) = refs
        noise_refs = (None, None, None)

    cdt = compute_dtype
    slope = jnp.asarray(0.1, cdt)   # nn.LeakyReLU(0.1) per the module spec

    def noisy_layer(h, n_ref, w_ref, b_ref):
        if n_ref is not None:                       # static (trace-time) branch
            h = h + n_ref[...].astype(cdt)          # x + randn_like(x)
        # bf16 MXU matmul, f32 accumulation; bias add on the f32 accumulator.
        y = jnp.dot(h.astype(jnp.bfloat16), w_ref[...],
                    preferred_element_type=jnp.float32) + b_ref[...]
        y = y.astype(cdt)
        return jnp.where(y > 0, y, slope * y)       # LeakyReLU(0.1)

    h = x_ref[...].astype(cdt)
    h = noisy_layer(h, noise_refs[0], w1_ref, b1_ref)
    h = noisy_layer(h, noise_refs[1], w2_ref, b2_ref)
    h = noisy_layer(h, noise_refs[2], w3_ref, b3_ref)

    out = jnp.dot(h.astype(jnp.bfloat16), wo_ref[...],
                  preferred_element_type=jnp.float32) + bo_ref[...]
    out_ref[...] = out.astype(out_ref.dtype)


# ---------------------------------------------------------------------------
# Wrapper
# ---------------------------------------------------------------------------
def _round_up(n, m):
    return pl.cdiv(n, m) * m


def prepare_params(params):
    """One-time parameter prep (hoisted out of the per-call path): weights to
    bf16 (MXU native), biases kept f32 with shape [1, out]."""
    prep = {}
    for k in ("w1", "w2", "w3", "wo"):
        prep[k] = params[k].astype(jnp.bfloat16)
    for k in ("b1", "b2", "b3", "bo"):
        prep[k] = params[k].astype(jnp.float32).reshape(1, -1)
    return prep


def _cond_noise_mlp_impl(x, prepared, noises=None, *, block_b=1024,
                         min_tiles=1, compute_dtype=jnp.float32):
    """Forward pass of CondNoiseMLP.

    x:        [B, cond_len] f32
    prepared: output of prepare_params (weights [in, out] bf16, biases [1, out] f32)
    noises:   None (deterministic path) or a tuple of three arrays with shapes
              ([B, cond_len], [B, hidden], [B, hidden]) — the randn_like noise
              added before each NoisyLayer's linear.
    """
    B, cond_len = x.shape
    hidden = prepared["w1"].shape[1]
    out_dim = prepared["wo"].shape[1]
    use_noise = noises is not None

    # ----- batch tiling -----------------------------------------------------
    tb = min(block_b, _round_up(B, 8))
    tb = max(8, (tb // 8) * 8)                      # sublane-aligned tile
    if min_tiles > 1:                               # megacore: force >=2 tiles
        per_tile = _round_up(pl.cdiv(_round_up(B, 8), min_tiles), 8)
        tb = min(tb, per_tile)
    b_pad = _round_up(B, tb)
    num_tiles = b_pad // tb

    def pad_rows(a):
        return jnp.pad(a, ((0, b_pad - a.shape[0]), (0, 0))) if b_pad != B else a

    x_p = pad_rows(x)

    # ----- BlockSpecs ---------------------------------------------------------
    def tile_spec(cols):
        # fresh batch tile per grid step (auto double-buffered pipelining)
        return pl.BlockSpec((tb, cols), lambda i: (i, 0))

    def const_spec(rows, cols):
        # weights / biases: same block every grid step -> VMEM-resident
        return pl.BlockSpec((rows, cols), lambda i: (0, 0))

    in_specs = [tile_spec(cond_len)]                # x
    inputs = [x_p]
    if use_noise:
        n1, n2, n3 = noises
        inputs += [pad_rows(n1), pad_rows(n2), pad_rows(n3)]
        in_specs += [tile_spec(cond_len), tile_spec(hidden), tile_spec(hidden)]
    inputs += [prepared["w1"], prepared["b1"], prepared["w2"], prepared["b2"],
               prepared["w3"], prepared["b3"], prepared["wo"], prepared["bo"]]
    in_specs += [
        const_spec(cond_len, hidden), const_spec(1, hidden),   # w1, b1
        const_spec(hidden, hidden), const_spec(1, hidden),     # w2, b2
        const_spec(hidden, hidden), const_spec(1, hidden),     # w3, b3
        const_spec(hidden, out_dim), const_spec(1, out_dim),   # wo, bo
    ]

    grid_spec = pltpu.PrefetchScalarGridSpec(
        num_scalar_prefetch=0,
        grid=(num_tiles,),
        in_specs=in_specs,
        out_specs=tile_spec(out_dim),
    )

    kernel = functools.partial(_cond_noise_mlp_kernel,
                               use_noise=use_noise,
                               compute_dtype=compute_dtype)

    out = pl.pallas_call(
        kernel,
        out_shape=jax.ShapeDtypeStruct((b_pad, out_dim), jnp.float32),
        grid_spec=grid_spec,
        compiler_params=pltpu.CompilerParams(
            dimension_semantics=("parallel",),      # megacore sharding on v7x
            vmem_limit_bytes=32 * 1024 * 1024,      # safe on v5e/v6e/v7x
        ),
    )(*inputs)

    return out[:B] if b_pad != B else out


cond_noise_mlp = jax.jit(
    _cond_noise_mlp_impl,
    static_argnames=("block_b", "min_tiles", "compute_dtype"))


def _default_config():
    """Pick activation dtype / megacore tiling from the local device kind."""
    compute_dtype, min_tiles = jnp.float32, 1
    try:
        kind = jax.devices()[0].device_kind.lower()
        if ("v6" in kind) or ("v7" in kind):
            compute_dtype = jnp.bfloat16            # native bf16 VPU/EUP
        if "v7" in kind:
            min_tiles = 2                           # 2 TensorCores per chip
    except Exception:
        pass
    return compute_dtype, min_tiles


# ---------------------------------------------------------------------------
# Params / noise / reference
# ---------------------------------------------------------------------------
def init_params(key, cond_len, seq_len, hidden_dim):
    """nn.Linear-style init (uniform +-1/sqrt(fan_in)); weights [in, out]."""
    def linear(k, fan_in, fan_out):
        kw, kb = jax.random.split(k)
        bound = 1.0 / jnp.sqrt(fan_in)
        w = jax.random.uniform(kw, (fan_in, fan_out), jnp.float32, -bound, bound)
        b = jax.random.uniform(kb, (1, fan_out), jnp.float32, -bound, bound)
        return w, b

    k1, k2, k3, k4 = jax.random.split(key, 4)
    w1, b1 = linear(k1, cond_len, hidden_dim)
    w2, b2 = linear(k2, hidden_dim, hidden_dim)
    w3, b3 = linear(k3, hidden_dim, hidden_dim)
    wo, bo = linear(k4, hidden_dim, seq_len - cond_len)
    return dict(w1=w1, b1=b1, w2=w2, b2=b2, w3=w3, b3=b3, wo=wo, bo=bo)


def make_noise(key, batch, cond_len, hidden_dim, compute_dtype):
    """randn_like noise for the three NoisyLayers."""
    k1, k2, k3 = jax.random.split(key, 3)
    n1 = jax.random.normal(k1, (batch, cond_len), jnp.float32).astype(compute_dtype)
    n2 = jax.random.normal(k2, (batch, hidden_dim), jnp.float32).astype(compute_dtype)
    n3 = jax.random.normal(k3, (batch, hidden_dim), jnp.float32).astype(compute_dtype)
    return (n1, n2, n3)


def reference_forward(x, params, noises, compute_dtype):
    """Pure-JAX reference mirroring the kernel's dtype chain (bf16 MXU inputs,
    f32 accumulation, activations in compute_dtype)."""
    cdt = compute_dtype

    def layer(h, n, w, b):
        if n is not None:
            h = h + n.astype(cdt)
        y = jnp.dot(h.astype(jnp.bfloat16), w.astype(jnp.bfloat16),
                    preferred_element_type=jnp.float32) + b.astype(jnp.float32)
        y = y.astype(cdt)
        return jnp.where(y > 0, y, jnp.asarray(0.1, cdt) * y)

    h = x.astype(cdt)
    h = layer(h, noises[0], params["w1"], params["b1"])
    h = layer(h, noises[1], params["w2"], params["b2"])
    h = layer(h, noises[2], params["w3"], params["b3"])
    return jnp.dot(h.astype(jnp.bfloat16), params["wo"].astype(jnp.bfloat16),
                   preferred_element_type=jnp.float32) + params["bo"].astype(jnp.float32)


# ---------------------------------------------------------------------------
# Test
# ---------------------------------------------------------------------------
if __name__ == "__main__":
    # CondNoiseMLP(cond_len=q, seq_len=p, hidden_dim) with the module default
    # hidden size; batch=64 keeps one (or two, on v7x) sublane-aligned tiles.
    batch, cond_len, seq_len, hidden_dim = 64, 16, 24, 256

    key = jax.random.PRNGKey(0)
    k_params, k_x, k_noise = jax.random.split(key, 3)
    params = init_params(k_params, cond_len, seq_len, hidden_dim)
    x = jax.random.normal(k_x, (batch, cond_len), jnp.float32)

    compute_dtype, min_tiles = _default_config()
    prepared = prepare_params(params)

    # 1) Deterministic path (no noise) must match the pure-JAX reference.
    out_det = jax.block_until_ready(
        cond_noise_mlp(x, prepared, None,
                       compute_dtype=compute_dtype, min_tiles=min_tiles))
    ref_det = reference_forward(x, params, (None, None, None), compute_dtype)
    assert out_det.shape == (batch, seq_len - cond_len)
    max_err = float(jnp.max(jnp.abs(out_det - ref_det)))
    assert jnp.allclose(out_det, ref_det, atol=5e-2, rtol=5e-2), max_err

    # 2) Noisy path: same noise tensors go to kernel and reference -> match,
    #    reproducible, finite, and different from the deterministic pass.
    noises = make_noise(k_noise, batch, cond_len, hidden_dim, compute_dtype)
    out_a = jax.block_until_ready(
        cond_noise_mlp(x, prepared, noises,
                       compute_dtype=compute_dtype, min_tiles=min_tiles))
    out_b = jax.block_until_ready(
        cond_noise_mlp(x, prepared, noises,
                       compute_dtype=compute_dtype, min_tiles=min_tiles))
    ref_noisy = reference_forward(x, params, noises, compute_dtype)
    assert out_a.shape == (batch, seq_len - cond_len)
    assert bool(jnp.all(jnp.isfinite(out_a)))
    max_err_n = float(jnp.max(jnp.abs(out_a - ref_noisy)))
    assert jnp.allclose(out_a, ref_noisy, atol=5e-2, rtol=5e-2), max_err_n
    assert jnp.allclose(out_a, out_b)                       # reproducible
    assert not jnp.allclose(out_a, out_det, atol=1e-3)      # noise has an effect

    print("KERNEL_OK")
</pallas_src>

<mosaic_0001>
module attributes {stable_mosaic.version = 11 : i64} {
  func.func @_cond_noise_mlp_kernel(%arg0: i32, %arg1: memref<64x16xf32, #tpu.memory_space<vmem>>, %arg2: memref<16x256xbf16, #tpu.memory_space<vmem>>, %arg3: memref<1x256xf32, #tpu.memory_space<vmem>>, %arg4: memref<256x256xbf16, #tpu.memory_space<vmem>>, %arg5: memref<1x256xf32, #tpu.memory_space<vmem>>, %arg6: memref<256x256xbf16, #tpu.memory_space<vmem>>, %arg7: memref<1x256xf32, #tpu.memory_space<vmem>>, %arg8: memref<256x8xbf16, #tpu.memory_space<vmem>>, %arg9: memref<1x8xf32, #tpu.memory_space<vmem>>, %arg10: memref<64x8xf32, #tpu.memory_space<vmem>>) attributes {dimension_semantics = [#tpu.dimension_semantics<parallel>], iteration_bounds = array<i64: 1>, scalar_prefetch = 0 : i64, scratch_operands = 0 : i64, tpu.core_type = #tpu.core_type<tc>, window_params = [{transform_indices = @transform_0, window_bounds = array<i64: 64, 16>}, {pipeline_mode = #tpu.pipeline_mode<synchronous>, transform_indices = @transform_1, window_bounds = array<i64: 16, 256>}, {pipeline_mode = #tpu.pipeline_mode<synchronous>, transform_indices = @transform_2, window_bounds = array<i64: 1, 256>}, {pipeline_mode = #tpu.pipeline_mode<synchronous>, transform_indices = @transform_3, window_bounds = array<i64: 256, 256>}, {pipeline_mode = #tpu.pipeline_mode<synchronous>, transform_indices = @transform_4, window_bounds = array<i64: 1, 256>}, {pipeline_mode = #tpu.pipeline_mode<synchronous>, transform_indices = @transform_5, window_bounds = array<i64: 256, 256>}, {pipeline_mode = #tpu.pipeline_mode<synchronous>, transform_indices = @transform_6, window_bounds = array<i64: 1, 256>}, {pipeline_mode = #tpu.pipeline_mode<synchronous>, transform_indices = @transform_7, window_bounds = array<i64: 256, 8>}, {pipeline_mode = #tpu.pipeline_mode<synchronous>, transform_indices = @transform_8, window_bounds = array<i64: 1, 8>}, {transform_indices = @transform_9, window_bounds = array<i64: 64, 8>}]} {
    %c0 = arith.constant 0 : index
    %c0_0 = arith.constant 0 : index
    %0 = vector.load %arg1[%c0, %c0_0] : memref<64x16xf32, #tpu.memory_space<vmem>>, vector<64x16xf32>
    %1 = arith.truncf %0 : vector<64x16xf32> to vector<64x16xbf16>
    %c0_1 = arith.constant 0 : index
    %c0_2 = arith.constant 0 : index
    %2 = vector.load %arg2[%c0_1, %c0_2] : memref<16x256xbf16, #tpu.memory_space<vmem>>, vector<16x256xbf16>
    %cst = arith.constant dense<0.000000e+00> : vector<64x256xf32>
    %3 = tpu.matmul %1, %2, %cst {dimension_numbers = #tpu.dot_dimension_numbers<[1], [0], [0], [1], [0, 0, 1, 1], [], []>} : vector<64x16xbf16>, vector<16x256xbf16>, vector<64x256xf32> -> vector<64x256xf32>
    %c0_3 = arith.constant 0 : index
    %c0_4 = arith.constant 0 : index
    %4 = vector.load %arg3[%c0_3, %c0_4] : memref<1x256xf32, #tpu.memory_space<vmem>>, vector<1x256xf32>
    %5 = vector.broadcast %4 : vector<1x256xf32> to vector<64x256xf32>
    %6 = arith.addf %3, %5 : vector<64x256xf32>
    %cst_5 = arith.constant 0.000000e+00 : f32
    %7 = vector.broadcast %cst_5 : f32 to vector<64x256xf32>
    %8 = arith.cmpf ogt, %6, %7 : vector<64x256xf32>
    %cst_6 = arith.constant 1.000000e-01 : f32
    %9 = vector.broadcast %cst_6 : f32 to vector<64x256xf32>
    %10 = arith.mulf %9, %6 : vector<64x256xf32>
    %11 = arith.select %8, %6, %10 : vector<64x256xi1>, vector<64x256xf32>
    %12 = arith.truncf %11 : vector<64x256xf32> to vector<64x256xbf16>
    %c0_7 = arith.constant 0 : index
    %c0_8 = arith.constant 0 : index
    %13 = vector.load %arg4[%c0_7, %c0_8] : memref<256x256xbf16, #tpu.memory_space<vmem>>, vector<256x256xbf16>
    %cst_9 = arith.constant dense<0.000000e+00> : vector<64x256xf32>
    %14 = tpu.matmul %12, %13, %cst_9 {dimension_numbers = #tpu.dot_dimension_numbers<[1], [0], [0], [1], [0, 0, 1, 1], [], []>} : vector<64x256xbf16>, vector<256x256xbf16>, vector<64x256xf32> -> vector<64x256xf32>
    %c0_10 = arith.constant 0 : index
    %c0_11 = arith.constant 0 : index
    %15 = vector.load %arg5[%c0_10, %c0_11] : memref<1x256xf32, #tpu.memory_space<vmem>>, vector<1x256xf32>
    %16 = vector.broadcast %15 : vector<1x256xf32> to vector<64x256xf32>
    %17 = arith.addf %14, %16 : vector<64x256xf32>
    %cst_12 = arith.constant 0.000000e+00 : f32
    %18 = vector.broadcast %cst_12 : f32 to vector<64x256xf32>
    %19 = arith.cmpf ogt, %17, %18 : vector<64x256xf32>
    %cst_13 = arith.constant 1.000000e-01 : f32
    %20 = vector.broadcast %cst_13 : f32 to vector<64x256xf32>
    %21 = arith.mulf %20, %17 : vector<64x256xf32>
    %22 = arith.select %19, %17, %21 : vector<64x256xi1>, vector<64x256xf32>
    %23 = arith.truncf %22 : vector<64x256xf32> to vector<64x256xbf16>
    %c0_14 = arith.constant 0 : index
    %c0_15 = arith.constant 0 : index
    %24 = vector.load %arg6[%c0_14, %c0_15] : memref<256x256xbf16, #tpu.memory_space<vmem>>, vector<256x256xbf16>
    %cst_16 = arith.constant dense<0.000000e+00> : vector<64x256xf32>
    %25 = tpu.matmul %23, %24, %cst_16 {dimension_numbers = #tpu.dot_dimension_numbers<[1], [0], [0], [1], [0, 0, 1, 1], [], []>} : vector<64x256xbf16>, vector<256x256xbf16>, vector<64x256xf32> -> vector<64x256xf32>
    %c0_17 = arith.constant 0 : index
    %c0_18 = arith.constant 0 : index
    %26 = vector.load %arg7[%c0_17, %c0_18] : memref<1x256xf32, #tpu.memory_space<vmem>>, vector<1x256xf32>
    %27 = vector.broadcast %26 : vector<1x256xf32> to vector<64x256xf32>
    %28 = arith.addf %25, %27 : vector<64x256xf32>
    %cst_19 = arith.constant 0.000000e+00 : f32
    %29 = vector.broadcast %cst_19 : f32 to vector<64x256xf32>
    %30 = arith.cmpf ogt, %28, %29 : vector<64x256xf32>
    %cst_20 = arith.constant 1.000000e-01 : f32
    %31 = vector.broadcast %cst_20 : f32 to vector<64x256xf32>
    %32 = arith.mulf %31, %28 : vector<64x256xf32>
    %33 = arith.select %30, %28, %32 : vector<64x256xi1>, vector<64x256xf32>
    %34 = arith.truncf %33 : vector<64x256xf32> to vector<64x256xbf16>
    %c0_21 = arith.constant 0 : index
    %c0_22 = arith.constant 0 : index
    %35 = vector.load %arg8[%c0_21, %c0_22] : memref<256x8xbf16, #tpu.memory_space<vmem>>, vector<256x8xbf16>
    %cst_23 = arith.constant dense<0.000000e+00> : vector<64x8xf32>
    %36 = tpu.matmul %34, %35, %cst_23 {dimension_numbers = #tpu.dot_dimension_numbers<[1], [0], [0], [1], [0, 0, 1, 1], [], []>} : vector<64x256xbf16>, vector<256x8xbf16>, vector<64x8xf32> -> vector<64x8xf32>
    %c0_24 = arith.constant 0 : index
    %c0_25 = arith.constant 0 : index
    %37 = vector.load %arg9[%c0_24, %c0_25] : memref<1x8xf32, #tpu.memory_space<vmem>>, vector<1x8xf32>
    %38 = vector.broadcast %37 : vector<1x8xf32> to vector<64x8xf32>
    %39 = arith.addf %36, %38 : vector<64x8xf32>
    %c0_26 = arith.constant 0 : index
    %c0_27 = arith.constant 0 : index
    %40 = vector.load %arg10[%c0_26, %c0_27] : memref<64x8xf32, #tpu.memory_space<vmem>>, vector<64x8xf32>
    tpu.vector_store %arg10[%c0_26, %c0_27], %39 {strides = array<i32>} : memref<64x8xf32, #tpu.memory_space<vmem>>, vector<64x8xf32>,
    return
  }
  func.func @transform_0(%arg0: i32) -> (i32, i32) {
    %c0_i32 = arith.constant 0 : i32
    %c0_i32_0 = arith.constant 0 : i32
    return %arg0, %c0_i32 : i32, i32
  }
  func.func @transform_1(%arg0: i32) -> (i32, i32) {
    %c0_i32 = arith.constant 0 : i32
    %c0_i32_0 = arith.constant 0 : i32
    %c0_i32_1 = arith.constant 0 : i32
    return %c0_i32, %c0_i32_0 : i32, i32
  }
  func.func @transform_2(%arg0: i32) -> (i32, i32) {
    %c0_i32 = arith.constant 0 : i32
    %c0_i32_0 = arith.constant 0 : i32
    %c0_i32_1 = arith.constant 0 : i32
    return %c0_i32, %c0_i32_0 : i32, i32
  }
  func.func @transform_3(%arg0: i32) -> (i32, i32) {
    %c0_i32 = arith.constant 0 : i32
    %c0_i32_0 = arith.constant 0 : i32
    %c0_i32_1 = arith.constant 0 : i32
    return %c0_i32, %c0_i32_0 : i32, i32
  }
  func.func @transform_4(%arg0: i32) -> (i32, i32) {
    %c0_i32 = arith.constant 0 : i32
    %c0_i32_0 = arith.constant 0 : i32
    %c0_i32_1 = arith.constant 0 : i32
    return %c0_i32, %c0_i32_0 : i32, i32
  }
  func.func @transform_5(%arg0: i32) -> (i32, i32) {
    %c0_i32 = arith.constant 0 : i32
    %c0_i32_0 = arith.constant 0 : i32
    %c0_i32_1 = arith.constant 0 : i32
    return %c0_i32, %c0_i32_0 : i32, i32
  }
  func.func @transform_6(%arg0: i32) -> (i32, i32) {
    %c0_i32 = arith.constant 0 : i32
    %c0_i32_0 = arith.constant 0 : i32
    %c0_i32_1 = arith.constant 0 : i32
    return %c0_i32, %c0_i32_0 : i32, i32
  }
  func.func @transform_7(%arg0: i32) -> (i32, i32) {
    %c0_i32 = arith.constant 0 : i32
    %c0_i32_0 = arith.constant 0 : i32
    %c0_i32_1 = arith.constant 0 : i32
    return %c0_i32, %c0_i32_0 : i32, i32
  }
  func.func @transform_8(%arg0: i32) -> (i32, i32) {
    %c0_i32 = arith.constant 0 : i32
    %c0_i32_0 = arith.constant 0 : i32
    %c0_i32_1 = arith.constant 0 : i32
    return %c0_i32, %c0_i32_0 : i32, i32
  }
  func.func @transform_9(%arg0: i32) -> (i32, i32) {
    %c0_i32 = arith.constant 0 : i32
    %c0_i32_0 = arith.constant 0 : i32
    return %arg0, %c0_i32 : i32, i32
  }
}

</mosaic_0001>

<llo_original>
// kernel: _cond_noise_mlp_impl.1
$region0: #{_cond_noise_mlp_impl.1}
  #allocation0 [shape = 'u32[]', space=smem, size = 0x4, offset = 0x4, fixed_abs, tag = 'smem constant byte address 0x4 - core index']
  #allocation1 [shape = 'u32[144,128]{1,0:T(1,128)}', space=vmem, size = 0x12000, scoped, tag = 'internal scratch']
  %s0 = inlined_call_operand.vmem [shape: f32[64,16], index: 0, kind: input, shape index: {}]
  %s1 = inlined_call_operand.vmem [shape: bf16[16,256], index: 1, kind: input, shape index: {}]
  %s2 = inlined_call_operand.vmem [shape: f32[1,256], index: 2, kind: input, shape index: {}]
  %s3 = inlined_call_operand.hbm [shape: bf16[256,256], index: 3, kind: input, shape index: {}]
  %s4 = inlined_call_operand.vmem [shape: f32[1,256], index: 4, kind: input, shape index: {}]
  %s5 = inlined_call_operand.hbm [shape: bf16[256,256], index: 5, kind: input, shape index: {}]
  %s6 = inlined_call_operand.vmem [shape: f32[1,256], index: 6, kind: input, shape index: {}]
  %s7 = inlined_call_operand.vmem [shape: bf16[256,8], index: 7, kind: input, shape index: {}]
  %s8 = inlined_call_operand.vmem [shape: f32[1,8], index: 8, kind: input, shape index: {}]
  %s9 = inlined_call_operand.vmem [shape: f32[64,8], index: 9, kind: output, shape index: {}]
  %s10 = sld [smem:[#allocation0]]
  $region54: #{_cond_noise_mlp_impl.1} parent=0
    _
  %s12 = ssub.s32 1, %s10
  %s13 = scalar_select 0, %s12, %s10
  $region1: #{_cond_noise_mlp_impl.1} parent=0
    #allocation2 [shape = 'u8[131072]{0}', space=vmem, size = 0x20000, scoped, tag = 'input window, operand 3, single buffered']
    #allocation3 [shape = 's32[1]{0}', space=sflag, size = 0x4, scoped, tag = 'scoped memory for _cond_noise_mlp_impl.1']
    #allocation4 [shape = 'u8[131072]{0}', space=vmem, size = 0x20000, scoped, tag = 'input window, operand 5, single buffered']
    #allocation5 [shape = 's32[1]{0}', space=sflag, size = 0x4, scoped, tag = 'scoped memory for _cond_noise_mlp_impl.1']
    %14 = vsyncpa [#allocation3], 0
    %15 = vsyncpa [#allocation5], 0
    // Predicated region
    $region2: #{_cond_noise_mlp_impl.1} parent=1 // pred_check
      _
    $region3: #{_cond_noise_mlp_impl.1} parent=1 // pred_check_branch
      %17 = sbr.rel (0) target = $region5
    $region4: #{_cond_noise_mlp_impl.1} parent=1 // pred_region
      _
    $region5: #{_cond_noise_mlp_impl.1} parent=1 // pred_fallthru
      _
    // Predicated region
    $region6: #{_cond_noise_mlp_impl.1} parent=1 // pred_check
      _
    $region7: #{_cond_noise_mlp_impl.1} parent=1 // pred_check_branch
      %19 = sbr.rel (0) target = $region9
    $region8: #{_cond_noise_mlp_impl.1} parent=1 // pred_region
      _
    $region9: #{_cond_noise_mlp_impl.1} parent=1 // pred_fallthru
      _
    // Predicated region
    $region10: #{_cond_noise_mlp_impl.1} parent=1 // pred_check
      _
    $region11: #{_cond_noise_mlp_impl.1} parent=1 // pred_check_branch
      %21 = sbr.rel (0) target = $region13
    $region12: #{_cond_noise_mlp_impl.1} parent=1 // pred_region
      _
    $region13: #{_cond_noise_mlp_impl.1} parent=1 // pred_fallthru
      _
    // Predicated region
    $region14: #{_cond_noise_mlp_impl.1} parent=1 // pred_check
      _
    $region15: #{_cond_noise_mlp_impl.1} parent=1 // pred_check_branch
      %23 = sbr.rel (0) target = $region17
    $region16: #{_cond_noise_mlp_impl.1} parent=1 // pred_region
      %s25 = ssub.s32 4096, 4096
      %26 = vsyncadd [#allocation3], %s25
      %s27 = sshll.u32 [#allocation2], 4
      %s28 = int_to_ptr.vmem [resolvable:$true] %s27
      %33 = dma.hbm_to_vmem [thread:$0]  %s3, 4096, %s28, [#allocation3], 128, 128, 8
    $region17: #{_cond_noise_mlp_impl.1} parent=1 // pred_fallthru
      _
    // Predicated region
    $region18: #{_cond_noise_mlp_impl.1} parent=1 // pred_check
      _
    $region19: #{_cond_noise_mlp_impl.1} parent=1 // pred_check_branch
      %35 = sbr.rel (0) target = $region21
    $region20: #{_cond_noise_mlp_impl.1} parent=1 // pred_region
      _
    $region21: #{_cond_noise_mlp_impl.1} parent=1 // pred_fallthru
      _
    // Predicated region
    $region22: #{_cond_noise_mlp_impl.1} parent=1 // pred_check
      _
    $region23: #{_cond_noise_mlp_impl.1} parent=1 // pred_check_branch
      %37 = sbr.rel (0) target = $region25
    $region24: #{_cond_noise_mlp_impl.1} parent=1 // pred_region
      %s39 = ssub.s32 4096, 4096
      %40 = vsyncadd [#allocation5], %s39
      %s41 = sshll.u32 [#allocation4], 4
      %s42 = int_to_ptr.vmem [resolvable:$true] %s41
      %47 = dma.hbm_to_vmem [thread:$0]  %s5, 4096, %s42, [#allocation5], 128, 128, 8
    $region25: #{_cond_noise_mlp_impl.1} parent=1 // pred_fallthru
      _
    // Predicated region
    $region26: #{_cond_noise_mlp_impl.1} parent=1 // pred_check
      _
    $region27: #{_cond_noise_mlp_impl.1} parent=1 // pred_check_branch
      %49 = sbr.rel (0) target = $region29
    $region28: #{_cond_noise_mlp_impl.1} parent=1 // pred_region
      _
    $region29: #{_cond_noise_mlp_impl.1} parent=1 // pred_fallthru
      _
    // Predicated region
    $region30: #{_cond_noise_mlp_impl.1} parent=1 // pred_check
      _
    $region31: #{_cond_noise_mlp_impl.1} parent=1 // pred_check_branch
      %51 = sbr.rel (0) target = $region33
    $region32: #{_cond_noise_mlp_impl.1} parent=1 // pred_region
      _
    $region33: #{_cond_noise_mlp_impl.1} parent=1 // pred_fallthru
      _
    // Predicated region
    $region34: #{_cond_noise_mlp_impl.1} parent=1 // pred_check
      _
    $region35: #{_cond_noise_mlp_impl.1} parent=1 // pred_check_branch
      %53 = sbr.rel (0) target = $region37
    $region36: #{_cond_noise_mlp_impl.1} parent=1 // pred_region
      _
    $region37: #{_cond_noise_mlp_impl.1} parent=1 // pred_fallthru
      _
    // Predicated region
    $region38: #{_cond_noise_mlp_impl.1} parent=1 // pred_check
      _
    $region39: #{_cond_noise_mlp_impl.1} parent=1 // pred_check_branch
      %55 = sbr.rel (0) target = $region41
    $region40: #{_cond_noise_mlp_impl.1} parent=1 // pred_region
      %56 = dma.done [#allocation3], 4096
    $region41: #{_cond_noise_mlp_impl.1} parent=1 // pred_fallthru
      _
    // Predicated region
    $region42: #{_cond_noise_mlp_impl.1} parent=1 // pred_check
      _
    $region43: #{_cond_noise_mlp_impl.1} parent=1 // pred_check_branch
      %58 = sbr.rel (0) target = $region45
    $region44: #{_cond_noise_mlp_impl.1} parent=1 // pred_region
      %59 = dma.done [#allocation5], 4096
    $region45: #{_cond_noise_mlp_impl.1} parent=1 // pred_fallthru
      _
    %v61 = vld [vmem:[%s0] sm:$0xff]
    %v62 = vld [vmem:[%s0 + $0x8] sm:$0xff]
    %v63 = vld [vmem:[%s0 + $0x10] sm:$0xff]
    %v64 = vld [vmem:[%s0 + $0x18] sm:$0xff]
    %v65 = vld [vmem:[%s0 + $0x20] sm:$0xff]
    %v66 = vld [vmem:[%s0 + $0x28] sm:$0xff]
    %v67 = vld [vmem:[%s0 + $0x30] sm:$0xff]
    %v68 = vld [vmem:[%s0 + $0x38] sm:$0xff]
    %v69 = vpack.c.bf16 %v62, %v61
    %v70 = vpack.c.bf16 %v64, %v63
    %v71 = vpack.c.bf16 %v66, %v65
    %v72 = vpack.c.bf16 %v68, %v67
    %v73 = vld [vmem:[%s1] sm:$0xff]
    %v74 = vld [vmem:[%s1 + $0x8] sm:$0xff]
    %v75 = vld [vmem:[%s2] sm:$0x3]
    %v77 = vlaneseq
    %v78 = vshrl.u32 %v77, 7
    %v79 = vsub.s32 0, %v78
    %v80 = vrot.slane %v75, %v79
    %v81 = vlaneseq
    %v82 = vshrl.u32 %v81, 7
    %v83 = vsub.s32 1, %v82
    %v84 = vrot.slane %v75, %v83
    %v89 = vunpack.c.l.b16 %v73
    %v90 = vunpack.c.h.b16 %v73
    %v91 = vunpack.c.l.b16 %v74
    %v92 = vunpack.c.h.b16 %v74
    %v93 = vpack.c.b16 %v91, %v89
    %v94 = vpack.c.b16 %v92, %v90
    %vm97 = vcmask 130048
    %v99 = vsel %vm97, %v69, 0
    %v102 = vsel %vm97, %v70, 0
    %v105 = vsel %vm97, %v71, 0
    %v108 = vsel %vm97, %v72, 0
    %110 = vmatprep.subr.bf16.mxu0 0
    %111 = vmatpush1.bf16.msra.mxu0 0
    %112 = vmatprep.subr.bf16.mxu0 0
    %113 = vmatpush1.bf16.msra.mxu0 0
    %114 = vmatprep.subr.bf16.mxu0 0
    %115 = vmatpush1.bf16.msra.mxu0 0
    %116 = vmatprep.subr.bf16.mxu0 0
    %117 = vmatpush1.bf16.msra.mxu0 0
    %118 = vmatprep.subr.bf16.mxu0 0
    %119 = vmatpush1.bf16.msra.mxu0 0
    %120 = vmatprep.subr.bf16.mxu0 0
    %121 = vmatpush1.bf16.msra.mxu0 0
    %122 = vmatprep.subr.bf16.mxu0 0
    %123 = vmatpush1.bf16.msra.mxu0 0
    %124 = vmatprep.subr.bf16.mxu0 %v94
    %125 = vmatpush1.bf16.msra.mxu0 %v93
    %126 = vmatprep.subr.bf16.mxu0 0
    %127 = vmatpush2.bf16.msra.mxu0 0
    %128 = vmatprep.subr.bf16.mxu0 0
    %129 = vmatpush2.bf16.msra.mxu0 0
    %130 = vmatprep.subr.bf16.mxu0 0
    %131 = vmatpush2.bf16.msra.mxu0 0
    %132 = vmatprep.subr.bf16.mxu0 0
    %133 = vmatpush2.bf16.msra.mxu0 0
    %134 = vmatprep.subr.bf16.mxu0 0
    %135 = vmatpush2.bf16.msra.mxu0 0
    %136 = vmatprep.subr.bf16.mxu0 0
    %137 = vmatpush2.bf16.msra.mxu0 0
    %138 = vmatprep.subr.bf16.mxu0 0
    %139 = vmatpush2.bf16.msra.mxu0 0
    %140 = vmatprep.subr.bf16.mxu0 0
    %141 = vmatpush2.bf16.msra.mxu0 0
    %142 = vmatprep.mubr.bf16.mxu0 0
    %143 = vmatmul.mubr.bf16.gmra.mxu0 %v99
    %v144 = vpop.f32.mrf.mxu0
    %v145 = vadd.f32 %v80, %v144
    %v146 = vpop.f32.mrf.mxu0
    %v147 = vadd.f32 %v84, %v146
    %v148 = vpop.f32.mrf.mxu0
    %v149 = vadd.f32 %v80, %v148
    %v150 = vpop.f32.mrf.mxu0
    %v151 = vadd.f32 %v84, %v150
    %152 = vmatprep.mubr.bf16.mxu0 0
    %153 = vmatmul.mubr.bf16.gmra.mxu0 %v102
    %v154 = vpop.f32.mrf.mxu0
    %v155 = vadd.f32 %v80, %v154
    %v156 = vpop.f32.mrf.mxu0
    %v157 = vadd.f32 %v84, %v156
    %v158 = vpop.f32.mrf.mxu0
    %v159 = vadd.f32 %v80, %v158
    %v160 = vpop.f32.mrf.mxu0
    %v161 = vadd.f32 %v84, %v160
    %162 = vmatprep.mubr.bf16.mxu0 0
    %163 = vmatmul.mubr.bf16.gmra.mxu0 %v105
    %v164 = vpop.f32.mrf.mxu0
    %v165 = vadd.f32 %v80, %v164
    %v166 = vpop.f32.mrf.mxu0
    %v167 = vadd.f32 %v84, %v166
    %v168 = vpop.f32.mrf.mxu0
    %v169 = vadd.f32 %v80, %v168
    %v170 = vpop.f32.mrf.mxu0
    %v171 = vadd.f32 %v84, %v170
    %172 = vmatprep.mubr.bf16.mxu0 0
    %173 = vmatmul.mubr.bf16.gmra.mxu0 %v108
    %v174 = vpop.f32.mrf.mxu0
    %v175 = vadd.f32 %v80, %v174
    %v176 = vpop.f32.mrf.mxu0
    %v177 = vadd.f32 %v84, %v176
    %v178 = vpop.f32.mrf.mxu0
    %v179 = vadd.f32 %v80, %v178
    %v180 = vpop.f32.mrf.mxu0
    %v181 = vadd.f32 %v84, %v180
    %182 = vdwg.mxu0
    %vm183 = vcmp.gt.f32.partialorder %v145, 0.0
    %vm184 = vcmp.gt.f32.partialorder %v147, 0.0
    %vm185 = vcmp.gt.f32.partialorder %v149, 0.0
    %vm186 = vcmp.gt.f32.partialorder %v151, 0.0
    %vm187 = vcmp.gt.f32.partialorder %v155, 0.0
    %vm188 = vcmp.gt.f32.partialorder %v157, 0.0
    %vm189 = vcmp.gt.f32.partialorder %v159, 0.0
    %vm190 = vcmp.gt.f32.partialorder %v161, 0.0
    %vm191 = vcmp.gt.f32.partialorder %v165, 0.0
    %vm192 = vcmp.gt.f32.partialorder %v167, 0.0
    %vm193 = vcmp.gt.f32.partialorder %v169, 0.0
    %vm194 = vcmp.gt.f32.partialorder %v171, 0.0
    %vm195 = vcmp.gt.f32.partialorder %v175, 0.0
    %vm196 = vcmp.gt.f32.partialorder %v177, 0.0
    %vm197 = vcmp.gt.f32.partialorder %v179, 0.0
    %vm198 = vcmp.gt.f32.partialorder %v181, 0.0
    %v199 = vmul.f32 %v145, 0.1
    %v200 = vmul.f32 %v147, 0.1
    %v201 = vmul.f32 %v149, 0.1
    %v202 = vmul.f32 %v151, 0.1
    %v203 = vmul.f32 %v155, 0.1
    %v204 = vmul.f32 %v157, 0.1
    %v205 = vmul.f32 %v159, 0.1
    %v206 = vmul.f32 %v161, 0.1
    %v207 = vmul.f32 %v165, 0.1
    %v208 = vmul.f32 %v167, 0.1
    %v209 = vmul.f32 %v169, 0.1
    %v210 = vmul.f32 %v171, 0.1
    %v211 = vmul.f32 %v175, 0.1
    %v212 = vmul.f32 %v177, 0.1
    %v213 = vmul.f32 %v179, 0.1
    %v214 = vmul.f32 %v181, 0.1
    %v215 = vsel %vm183, %v145, %v199
    %v216 = vsel %vm184, %v147, %v200
    %v217 = vsel %vm185, %v149, %v201
    %v218 = vsel %vm186, %v151, %v202
    %v219 = vsel %vm187, %v155, %v203
    %v220 = vsel %vm188, %v157, %v204
    %v221 = vsel %vm189, %v159, %v205
    %v222 = vsel %vm190, %v161, %v206
    %v223 = vsel %vm191, %v165, %v207
    %v224 = vsel %vm192, %v167, %v208
    %v225 = vsel %vm193, %v169, %v209
    %v226 = vsel %vm194, %v171, %v210
    %v227 = vsel %vm195, %v175, %v211
    %v228 = vsel %vm196, %v177, %v212
    %v229 = vsel %vm197, %v179, %v213
    %v230 = vsel %vm198, %v181, %v214
    %v231 = vpack.c.bf16 %v217, %v215
    %v232 = vpack.c.bf16 %v218, %v216
    %v233 = vpack.c.bf16 %v221, %v219
    %v234 = vpack.c.bf16 %v222, %v220
    %v235 = vpack.c.bf16 %v225, %v223
    %v236 = vpack.c.bf16 %v226, %v224
    %v237 = vpack.c.bf16 %v229, %v227
    %v238 = vpack.c.bf16 %v230, %v228
    %v239 = vld [vmem:[#allocation2] sm:$0xff]
    %v240 = vld [vmem:[#allocation2 + $0x8] sm:$0xff]
    %v241 = vld [vmem:[#allocation2 + $0x10] sm:$0xff]
    %v242 = vld [vmem:[#allocation2 + $0x18] sm:$0xff]
    %v243 = vld [vmem:[#allocation2 + $0x20] sm:$0xff]
    %v244 = vld [vmem:[#allocation2 + $0x28] sm:$0xff]
    %v245 = vld [vmem:[#allocation2 + $0x30] sm:$0xff]
    %v246 = vld [vmem:[#allocation2 + $0x38] sm:$0xff]
    %v247 = vld [vmem:[#allocation2 + $0x40] sm:$0xff]
    %v248 = vld [vmem:[#allocation2 + $0x48] sm:$0xff]
    %v249 = vld [vmem:[#allocation2 + $0x50] sm:$0xff]
    %v250 = vld [vmem:[#allocation2 + $0x58] sm:$0xff]
    %v251 = vld [vmem:[#allocation2 + $0x60] sm:$0xff]
    %v252 = vld [vmem:[#allocation2 + $0x68] sm:$0xff]
    %v253 = vld [vmem:[#allocation2 + $0x70] sm:$0xff]
    %v254 = vld [vmem:[#allocation2 + $0x78] sm:$0xff]
    %v255 = vld [vmem:[#allocation2 + $0x80] sm:$0xff]
    %v256 = vld [vmem:[#allocation2 + $0x88] sm:$0xff]
    %v257 = vld [vmem:[#allocation2 + $0x90] sm:$0xff]
    %v258 = vld [vmem:[#allocation2 + $0x98] sm:$0xff]
    %v259 = vld [vmem:[#allocation2 + $0xa0] sm:$0xff]
    %v260 = vld [vmem:[#allocation2 + $0xa8] sm:$0xff]
    %v261 = vld [vmem:[#allocation2 + $0xb0] sm:$0xff]
    %v262 = vld [vmem:[#allocation2 + $0xb8] sm:$0xff]
    %v263 = vld [vmem:[#allocation2 + $0xc0] sm:$0xff]
    %v264 = vld [vmem:[#allocation2 + $0xc8] sm:$0xff]
    %v265 = vld [vmem:[#allocation2 + $0xd0] sm:$0xff]
    %v266 = vld [vmem:[#allocation2 + $0xd8] sm:$0xff]
    %v267 = vld [vmem:[#allocation2 + $0xe0] sm:$0xff]
    %v268 = vld [vmem:[#allocation2 + $0xe8] sm:$0xff]
    %v269 = vld [vmem:[#allocation2 + $0xf0] sm:$0xff]
    %v270 = vld [vmem:[#allocation2 + $0xf8] sm:$0xff]
    %v271 = vld [vmem:[%s4] sm:$0x3]
    %v273 = vlaneseq
    %v274 = vshrl.u32 %v273, 7
    %v275 = vsub.s32 0, %v274
    %v276 = vrot.slane %v271, %v275
    %v277 = vlaneseq
    %v278 = vshrl.u32 %v277, 7
    %v279 = vsub.s32 1, %v278
    %v280 = vrot.slane %v271, %v279
    %v315 = vunpack.c.l.b16 %v239
    %v316 = vunpack.c.h.b16 %v239
    %v317 = vunpack.c.l.b16 %v240
    %v318 = vunpack.c.h.b16 %v240
    %v319 = vunpack.c.l.b16 %v241
    %v320 = vunpack.c.h.b16 %v241
    %v321 = vunpack.c.l.b16 %v242
    %v322 = vunpack.c.h.b16 %v242
    %v323 = vunpack.c.l.b16 %v243
    %v324 = vunpack.c.h.b16 %v243
    %v325 = vunpack.c.l.b16 %v244
    %v326 = vunpack.c.h.b16 %v244
    %v327 = vunpack.c.l.b16 %v245
    %v328 = vunpack.c.h.b16 %v245
    %v329 = vunpack.c.l.b16 %v246
    %v330 = vunpack.c.h.b16 %v246
    %v331 = vunpack.c.l.b16 %v247
    %v332 = vunpack.c.h.b16 %v247
    %v333 = vunpack.c.l.b16 %v248
    %v334 = vunpack.c.h.b16 %v248
    %v335 = vunpack.c.l.b16 %v249
    %v336 = vunpack.c.h.b16 %v249
    %v337 = vunpack.c.l.b16 %v250
    %v338 = vunpack.c.h.b16 %v250
    %v339 = vunpack.c.l.b16 %v251
    %v340 = vunpack.c.h.b16 %v251
    %v341 = vunpack.c.l.b16 %v252
    %v342 = vunpack.c.h.b16 %v252
    %v343 = vunpack.c.l.b16 %v253
    %v344 = vunpack.c.h.b16 %v253
    %v345 = vunpack.c.l.b16 %v254
    %v346 = vunpack.c.h.b16 %v254
    %v347 = vunpack.c.l.b16 %v255
    %v348 = vunpack.c.h.b16 %v255
    %v349 = vunpack.c.l.b16 %v256
    %v350 = vunpack.c.h.b16 %v256
    %v351 = vunpack.c.l.b16 %v257
    %v352 = vunpack.c.h.b16 %v257
    %v353 = vunpack.c.l.b16 %v258
    %v354 = vunpack.c.h.b16 %v258
    %v355 = vunpack.c.l.b16 %v259
    %v356 = vunpack.c.h.b16 %v259
    %v357 = vunpack.c.l.b16 %v260
    %v358 = vunpack.c.h.b16 %v260
    %v359 = vunpack.c.l.b16 %v261
    %v360 = vunpack.c.h.b16 %v261
    %v361 = vunpack.c.l.b16 %v262
    %v362 = vunpack.c.h.b16 %v262
    %v363 = vunpack.c.l.b16 %v263
    %v364 = vunpack.c.h.b16 %v263
    %v365 = vunpack.c.l.b16 %v264
    %v366 = vunpack.c.h.b16 %v264
    %v367 = vunpack.c.l.b16 %v265
    %v368 = vunpack.c.h.b16 %v265
    %v369 = vunpack.c.l.b16 %v266
    %v370 = vunpack.c.h.b16 %v266
    %v371 = vunpack.c.l.b16 %v267
    %v372 = vunpack.c.h.b16 %v267
    %v373 = vunpack.c.l.b16 %v268
    %v374 = vunpack.c.h.b16 %v268
    %v375 = vunpack.c.l.b16 %v269
    %v376 = vunpack.c.h.b16 %v269
    %v377 = vunpack.c.l.b16 %v270
    %v378 = vunpack.c.h.b16 %v270
    %v379 = vpack.c.b16 %v317, %v315
    %v380 = vpack.c.b16 %v318, %v316
    %v381 = vpack.c.b16 %v321, %v319
    %v382 = vpack.c.b16 %v322, %v320
    %v383 = vpack.c.b16 %v325, %v323
    %v384 = vpack.c.b16 %v326, %v324
    %v385 = vpack.c.b16 %v329, %v327
    %v386 = vpack.c.b16 %v330, %v328
    %v387 = vpack.c.b16 %v333, %v331
    %v388 = vpack.c.b16 %v334, %v332
    %v389 = vpack.c.b16 %v337, %v335
    %v390 = vpack.c.b16 %v338, %v336
    %v391 = vpack.c.b16 %v341, %v339
    %v392 = vpack.c.b16 %v342, %v340
    %v393 = vpack.c.b16 %v345, %v343
    %v394 = vpack.c.b16 %v346, %v344
    %v395 = vpack.c.b16 %v349, %v347
    %v396 = vpack.c.b16 %v350, %v348
    %v397 = vpack.c.b16 %v353, %v351
    %v398 = vpack.c.b16 %v354, %v352
    %v399 = vpack.c.b16 %v357, %v355
    %v400 = vpack.c.b16 %v358, %v356
    %v401 = vpack.c.b16 %v361, %v359
    %v402 = vpack.c.b16 %v362, %v360
    %v403 = vpack.c.b16 %v365, %v363
    %v404 = vpack.c.b16 %v366, %v364
    %v405 = vpack.c.b16 %v369, %v367
    %v406 = vpack.c.b16 %v370, %v368
    %v407 = vpack.c.b16 %v373, %v371
    %v408 = vpack.c.b16 %v374, %v372
    %v409 = vpack.c.b16 %v377, %v375
    %v410 = vpack.c.b16 %v378, %v376
    %443 = vmatprep.subr.bf16.mxu0 %v394
    %444 = vmatpush1.bf16.msra.mxu0 %v393
    %445 = vmatprep.subr.bf16.mxu0 %v392
    %446 = vmatpush1.bf16.msra.mxu0 %v391
    %447 = vmatprep.subr.bf16.mxu0 %v390
    %448 = vmatpush1.bf16.msra.mxu0 %v389
    %449 = vmatprep.subr.bf16.mxu0 %v388
    %450 = vmatpush1.bf16.msra.mxu0 %v387
    %451 = vmatprep.subr.bf16.mxu0 %v386
    %452 = vmatpush1.bf16.msra.mxu0 %v385
    %453 = vmatprep.subr.bf16.mxu0 %v384
    %454 = vmatpush1.bf16.msra.mxu0 %v383
    %455 = vmatprep.subr.bf16.mxu0 %v382
    %456 = vmatpush1.bf16.msra.mxu0 %v381
    %457 = vmatprep.subr.bf16.mxu0 %v380
    %458 = vmatpush1.bf16.msra.mxu0 %v379
    %459 = vmatprep.subr.bf16.mxu0 %v410
    %460 = vmatpush2.bf16.msra.mxu0 %v409
    %461 = vmatprep.subr.bf16.mxu0 %v408
    %462 = vmatpush2.bf16.msra.mxu0 %v407
    %463 = vmatprep.subr.bf16.mxu0 %v406
    %464 = vmatpush2.bf16.msra.mxu0 %v405
    %465 = vmatprep.subr.bf16.mxu0 %v404
    %466 = vmatpush2.bf16.msra.mxu0 %v403
    %467 = vmatprep.subr.bf16.mxu0 %v402
    %468 = vmatpush2.bf16.msra.mxu0 %v401
    %469 = vmatprep.subr.bf16.mxu0 %v400
    %470 = vmatpush2.bf16.msra.mxu0 %v399
    %471 = vmatprep.subr.bf16.mxu0 %v398
    %472 = vmatpush2.bf16.msra.mxu0 %v397
    %473 = vmatprep.subr.bf16.mxu0 %v396
    %474 = vmatpush2.bf16.msra.mxu0 %v395
    %475 = vmatprep.mubr.bf16.mxu0 %v232
    %476 = vmatmul.mubr.bf16.gmra.mxu0 %v231
    %v477 = vpop.f32.mrf.mxu0
    %v478 = vadd.f32 %v276, %v477
    %v479 = vpop.f32.mrf.mxu0
    %v480 = vadd.f32 %v280, %v479
    %v481 = vpop.f32.mrf.mxu0
    %v482 = vadd.f32 %v276, %v481
    %v483 = vpop.f32.mrf.mxu0
    %v484 = vadd.f32 %v280, %v483
    %485 = vmatprep.mubr.bf16.mxu0 %v234
    %486 = vmatmul.mubr.bf16.gmra.mxu0 %v233
    %v487 = vpop.f32.mrf.mxu0
    %v488 = vadd.f32 %v276, %v487
    %v489 = vpop.f32.mrf.mxu0
    %v490 = vadd.f32 %v280, %v489
    %v491 = vpop.f32.mrf.mxu0
    %v492 = vadd.f32 %v276, %v491
    %v493 = vpop.f32.mrf.mxu0
    %v494 = vadd.f32 %v280, %v493
    %495 = vmatprep.mubr.bf16.mxu0 %v236
    %496 = vmatmul.mubr.bf16.gmra.mxu0 %v235
    %v497 = vpop.f32.mrf.mxu0
    %v498 = vadd.f32 %v276, %v497
    %v499 = vpop.f32.mrf.mxu0
    %v500 = vadd.f32 %v280, %v499
    %v501 = vpop.f32.mrf.mxu0
    %v502 = vadd.f32 %v276, %v501
    %v503 = vpop.f32.mrf.mxu0
    %v504 = vadd.f32 %v280, %v503
    %505 = vmatprep.mubr.bf16.mxu0 %v238
    %506 = vmatmul.mubr.bf16.gmra.mxu0 %v237
    %v507 = vpop.f32.mrf.mxu0
    %v508 = vadd.f32 %v276, %v507
    %v509 = vpop.f32.mrf.mxu0
    %v510 = vadd.f32 %v280, %v509
    %v511 = vpop.f32.mrf.mxu0
    %v512 = vadd.f32 %v276, %v511
    %v513 = vpop.f32.mrf.mxu0
    %v514 = vadd.f32 %v280, %v513
    %515 = vdwg.mxu0
    %vm516 = vcmp.gt.f32.partialorder %v478, 0.0
    %vm517 = vcmp.gt.f32.partialorder %v480, 0.0
    %vm518 = vcmp.gt.f32.partialorder %v482, 0.0
    %vm519 = vcmp.gt.f32.partialorder %v484, 0.0
    %vm520 = vcmp.gt.f32.partialorder %v488, 0.0
    %vm521 = vcmp.gt.f32.partialorder %v490, 0.0
    %vm522 = vcmp.gt.f32.partialorder %v492, 0.0
    %vm523 = vcmp.gt.f32.partialorder %v494, 0.0
    %vm524 = vcmp.gt.f32.partialorder %v498, 0.0
    %vm525 = vcmp.gt.f32.partialorder %v500, 0.0
    %vm526 = vcmp.gt.f32.partialorder %v502, 0.0
    %vm527 = vcmp.gt.f32.partialorder %v504, 0.0
    %vm528 = vcmp.gt.f32.partialorder %v508, 0.0
    %vm529 = vcmp.gt.f32.partialorder %v510, 0.0
    %vm530 = vcmp.gt.f32.partialorder %v512, 0.0
    %vm531 = vcmp.gt.f32.partialorder %v514, 0.0
    %v532 = vmul.f32 %v478, 0.1
    %v533 = vmul.f32 %v480, 0.1
    %v534 = vmul.f32 %v482, 0.1
    %v535 = vmul.f32 %v484, 0.1
    %v536 = vmul.f32 %v488, 0.1
    %v537 = vmul.f32 %v490, 0.1
    %v538 = vmul.f32 %v492, 0.1
    %v539 = vmul.f32 %v494, 0.1
    %v540 = vmul.f32 %v498, 0.1
    %v541 = vmul.f32 %v500, 0.1
    %v542 = vmul.f32 %v502, 0.1
    %v543 = vmul.f32 %v504, 0.1
    %v544 = vmul.f32 %v508, 0.1
    %v545 = vmul.f32 %v510, 0.1
    %v546 = vmul.f32 %v512, 0.1
    %v547 = vmul.f32 %v514, 0.1
    %v548 = vsel %vm516, %v478, %v532
    %v549 = vsel %vm517, %v480, %v533
    %v550 = vsel %vm518, %v482, %v534
    %v551 = vsel %vm519, %v484, %v535
    %v552 = vsel %vm520, %v488, %v536
    %v553 = vsel %vm521, %v490, %v537
    %v554 = vsel %vm522, %v492, %v538
    %v555 = vsel %vm523, %v494, %v539
    %v556 = vsel %vm524, %v498, %v540
    %v557 = vsel %vm525, %v500, %v541
    %v558 = vsel %vm526, %v502, %v542
    %v559 = vsel %vm527, %v504, %v543
    %v560 = vsel %vm528, %v508, %v544
    %v561 = vsel %vm529, %v510, %v545
    %v562 = vsel %vm530, %v512, %v546
    %v563 = vsel %vm531, %v514, %v547
    %v564 = vpack.c.bf16 %v550, %v548
    %v565 = vpack.c.bf16 %v551, %v549
    %v566 = vpack.c.bf16 %v554, %v552
    %v567 = vpack.c.bf16 %v555, %v553
    %v568 = vpack.c.bf16 %v558, %v556
    %v569 = vpack.c.bf16 %v559, %v557
    %v570 = vpack.c.bf16 %v562, %v560
    %v571 = vpack.c.bf16 %v563, %v561
    %v572 = vld [vmem:[#allocation4] sm:$0xff]
    %v573 = vld [vmem:[#allocation4 + $0x8] sm:$0xff]
    %v574 = vld [vmem:[#allocation4 + $0x10] sm:$0xff]
    %v575 = vld [vmem:[#allocation4 + $0x18] sm:$0xff]
    %v576 = vld [vmem:[#allocation4 + $0x20] sm:$0xff]
    %v577 = vld [vmem:[#allocation4 + $0x28] sm:$0xff]
    %v578 = vld [vmem:[#allocation4 + $0x30] sm:$0xff]
    %v579 = vld [vmem:[#allocation4 + $0x38] sm:$0xff]
    %v580 = vld [vmem:[#allocation4 + $0x40] sm:$0xff]
    %v581 = vld [vmem:[#allocation4 + $0x48] sm:$0xff]
    %v582 = vld [vmem:[#allocation4 + $0x50] sm:$0xff]
    %v583 = vld [vmem:[#allocation4 + $0x58] sm:$0xff]
    %v584 = vld [vmem:[#allocation4 + $0x60] sm:$0xff]
    %v585 = vld [vmem:[#allocation4 + $0x68] sm:$0xff]
    %v586 = vld [vmem:[#allocation4 + $0x70] sm:$0xff]
    %v587 = vld [vmem:[#allocation4 + $0x78] sm:$0xff]
    %v588 = vld [vmem:[#allocation4 + $0x80] sm:$0xff]
    %v589 = vld [vmem:[#allocation4 + $0x88] sm:$0xff]
    %v590 = vld [vmem:[#allocation4 + $0x90] sm:$0xff]
    %v591 = vld [vmem:[#allocation4 + $0x98] sm:$0xff]
    %v592 = vld [vmem:[#allocation4 + $0xa0] sm:$0xff]
    %v593 = vld [vmem:[#allocation4 + $0xa8] sm:$0xff]
    %v594 = vld [vmem:[#allocation4 + $0xb0] sm:$0xff]
    %v595 = vld [vmem:[#allocation4 + $0xb8] sm:$0xff]
    %v596 = vld [vmem:[#allocation4 + $0xc0] sm:$0xff]
    %v597 = vld [vmem:[#allocation4 + $0xc8] sm:$0xff]
    %v598 = vld [vmem:[#allocation4 + $0xd0] sm:$0xff]
    %v599 = vld [vmem:[#allocation4 + $0xd8] sm:$0xff]
    %v600 = vld [vmem:[#allocation4 + $0xe0] sm:$0xff]
    %v601 = vld [vmem:[#allocation4 + $0xe8] sm:$0xff]
    %v602 = vld [vmem:[#allocation4 + $0xf0] sm:$0xff]
    %v603 = vld [vmem:[#allocation4 + $0xf8] sm:$0xff]
    %v604 = vld [vmem:[%s6] sm:$0x3]
    %v606 = vlaneseq
    %v607 = vshrl.u32 %v606, 7
    %v608 = vsub.s32 0, %v607
    %v609 = vrot.slane %v604, %v608
    %v610 = vlaneseq
    %v611 = vshrl.u32 %v610, 7
    %v612 = vsub.s32 1, %v611
    %v613 = vrot.slane %v604, %v612
    %v648 = vunpack.c.l.b16 %v572
    %v649 = vunpack.c.h.b16 %v572
    %v650 = vunpack.c.l.b16 %v573
    %v651 = vunpack.c.h.b16 %v573
    %v652 = vunpack.c.l.b16 %v574
    %v653 = vunpack.c.h.b16 %v574
    %v654 = vunpack.c.l.b16 %v575
    %v655 = vunpack.c.h.b16 %v575
    %v656 = vunpack.c.l.b16 %v576
    %v657 = vunpack.c.h.b16 %v576
    %v658 = vunpack.c.l.b16 %v577
    %v659 = vunpack.c.h.b16 %v577
    %v660 = vunpack.c.l.b16 %v578
    %v661 = vunpack.c.h.b16 %v578
    %v662 = vunpack.c.l.b16 %v579
    %v663 = vunpack.c.h.b16 %v579
    %v664 = vunpack.c.l.b16 %v580
    %v665 = vunpack.c.h.b16 %v580
    %v666 = vunpack.c.l.b16 %v581
    %v667 = vunpack.c.h.b16 %v581
    %v668 = vunpack.c.l.b16 %v582
    %v669 = vunpack.c.h.b16 %v582
    %v670 = vunpack.c.l.b16 %v583
    %v671 = vunpack.c.h.b16 %v583
    %v672 = vunpack.c.l.b16 %v584
    %v673 = vunpack.c.h.b16 %v584
    %v674 = vunpack.c.l.b16 %v585
    %v675 = vunpack.c.h.b16 %v585
    %v676 = vunpack.c.l.b16 %v586
    %v677 = vunpack.c.h.b16 %v586
    %v678 = vunpack.c.l.b16 %v587
    %v679 = vunpack.c.h.b16 %v587
    %v680 = vunpack.c.l.b16 %v588
    %v681 = vunpack.c.h.b16 %v588
    %v682 = vunpack.c.l.b16 %v589
    %v683 = vunpack.c.h.b16 %v589
    %v684 = vunpack.c.l.b16 %v590
    %v685 = vunpack.c.h.b16 %v590
    %v686 = vunpack.c.l.b16 %v591
    %v687 = vunpack.c.h.b16 %v591
    %v688 = vunpack.c.l.b16 %v592
    %v689 = vunpack.c.h.b16 %v592
    %v690 = vunpack.c.l.b16 %v593
    %v691 = vunpack.c.h.b16 %v593
    %v692 = vunpack.c.l.b16 %v594
    %v693 = vunpack.c.h.b16 %v594
    %v694 = vunpack.c.l.b16 %v595
    %v695 = vunpack.c.h.b16 %v595
    %v696 = vunpack.c.l.b16 %v596
    %v697 = vunpack.c.h.b16 %v596
    %v698 = vunpack.c.l.b16 %v597
    %v699 = vunpack.c.h.b16 %v597
    %v700 = vunpack.c.l.b16 %v598
    %v701 = vunpack.c.h.b16 %v598
    %v702 = vunpack.c.l.b16 %v599
    %v703 = vunpack.c.h.b16 %v599
    %v704 = vunpack.c.l.b16 %v600
    %v705 = vunpack.c.h.b16 %v600
    %v706 = vunpack.c.l.b16 %v601
    %v707 = vunpack.c.h.b16 %v601
    %v708 = vunpack.c.l.b16 %v602
    %v709 = vunpack.c.h.b16 %v602
    %v710 = vunpack.c.l.b16 %v603
    %v711 = vunpack.c.h.b16 %v603
    %v712 = vpack.c.b16 %v650, %v648
    %v713 = vpack.c.b16 %v651, %v649
    %v714 = vpack.c.b16 %v654, %v652
    %v715 = vpack.c.b16 %v655, %v653
    %v716 = vpack.c.b16 %v658, %v656
    %v717 = vpack.c.b16 %v659, %v657
    %v718 = vpack.c.b16 %v662, %v660
    %v719 = vpack.c.b16 %v663, %v661
    %v720 = vpack.c.b16 %v666, %v664
    %v721 = vpack.c.b16 %v667, %v665
    %v722 = vpack.c.b16 %v670, %v668
    %v723 = vpack.c.b16 %v671, %v669
    %v724 = vpack.c.b16 %v674, %v672
    %v725 = vpack.c.b16 %v675, %v673
    %v726 = vpack.c.b16 %v678, %v676
    %v727 = vpack.c.b16 %v679, %v677
    %v728 = vpack.c.b16 %v682, %v680
    %v729 = vpack.c.b16 %v683, %v681
    %v730 = vpack.c.b16 %v686, %v684
    %v731 = vpack.c.b16 %v687, %v685
    %v732 = vpack.c.b16 %v690, %v688
    %v733 = vpack.c.b16 %v691, %v689
    %v734 = vpack.c.b16 %v694, %v692
    %v735 = vpack.c.b16 %v695, %v693
    %v736 = vpack.c.b16 %v698, %v696
    %v737 = vpack.c.b16 %v699, %v697
    %v738 = vpack.c.b16 %v702, %v700
    %v739 = vpack.c.b16 %v703, %v701
    %v740 = vpack.c.b16 %v706, %v704
    %v741 = vpack.c.b16 %v707, %v705
    %v742 = vpack.c.b16 %v710, %v708
    %v743 = vpack.c.b16 %v711, %v709
    %776 = vmatprep.subr.bf16.mxu0 %v727
    %777 = vmatpush1.bf16.msra.mxu0 %v726
    %778 = vmatprep.subr.bf16.mxu0 %v725
    %779 = vmatpush1.bf16.msra.mxu0 %v724
    %780 = vmatprep.subr.bf16.mxu0 %v723
    %781 = vmatpush1.bf16.msra.mxu0 %v722
    %782 = vmatprep.subr.bf16.mxu0 %v721
    %783 = vmatpush1.bf16.msra.mxu0 %v720
    %784 = vmatprep.subr.bf16.mxu0 %v719
    %785 = vmatpush1.bf16.msra.mxu0 %v718
    %786 = vmatprep.subr.bf16.mxu0 %v717
    %787 = vmatpush1.bf16.msra.mxu0 %v716
    %788 = vmatprep.subr.bf16.mxu0 %v715
    %789 = vmatpush1.bf16.msra.mxu0 %v714
    %790 = vmatprep.subr.bf16.mxu0 %v713
    %791 = vmatpush1.bf16.msra.mxu0 %v712
    %792 = vmatprep.subr.bf16.mxu0 %v743
    %793 = vmatpush2.bf16.msra.mxu0 %v742
    %794 = vmatprep.subr.bf16.mxu0 %v741
    %795 = vmatpush2.bf16.msra.mxu0 %v740
    %796 = vmatprep.subr.bf16.mxu0 %v739
    %797 = vmatpush2.bf16.msra.mxu0 %v738
    %798 = vmatprep.subr.bf16.mxu0 %v737
    %799 = vmatpush2.bf16.msra.mxu0 %v736
    %800 = vmatprep.subr.bf16.mxu0 %v735
    %801 = vmatpush2.bf16.msra.mxu0 %v734
    %802 = vmatprep.subr.bf16.mxu0 %v733
    %803 = vmatpush2.bf16.msra.mxu0 %v732
    %804 = vmatprep.subr.bf16.mxu0 %v731
    %805 = vmatpush2.bf16.msra.mxu0 %v730
    %806 = vmatprep.subr.bf16.mxu0 %v729
    %807 = vmatpush2.bf16.msra.mxu0 %v728
    %808 = vmatprep.mubr.bf16.mxu0 %v565
    %809 = vmatmul.mubr.bf16.gmra.mxu0 %v564
    %v810 = vpop.f32.mrf.mxu0
    %v811 = vadd.f32 %v609, %v810
    %v812 = vpop.f32.mrf.mxu0
    %v813 = vadd.f32 %v613, %v812
    %v814 = vpop.f32.mrf.mxu0
    %v815 = vadd.f32 %v609, %v814
    %v816 = vpop.f32.mrf.mxu0
    %v817 = vadd.f32 %v613, %v816
    %818 = vmatprep.mubr.bf16.mxu0 %v567
    %819 = vmatmul.mubr.bf16.gmra.mxu0 %v566
    %v820 = vpop.f32.mrf.mxu0
    %v821 = vadd.f32 %v609, %v820
    %v822 = vpop.f32.mrf.mxu0
    %v823 = vadd.f32 %v613, %v822
    %v824 = vpop.f32.mrf.mxu0
    %v825 = vadd.f32 %v609, %v824
    %v826 = vpop.f32.mrf.mxu0
    %v827 = vadd.f32 %v613, %v826
    %828 = vmatprep.mubr.bf16.mxu0 %v569
    %829 = vmatmul.mubr.bf16.gmra.mxu0 %v568
    %v830 = vpop.f32.mrf.mxu0
    %v831 = vadd.f32 %v609, %v830
    %v832 = vpop.f32.mrf.mxu0
    %v833 = vadd.f32 %v613, %v832
    %v834 = vpop.f32.mrf.mxu0
    %v835 = vadd.f32 %v609, %v834
    %v836 = vpop.f32.mrf.mxu0
    %v837 = vadd.f32 %v613, %v836
    %838 = vmatprep.mubr.bf16.mxu0 %v571
    %839 = vmatmul.mubr.bf16.gmra.mxu0 %v570
    %v840 = vpop.f32.mrf.mxu0
    %v841 = vadd.f32 %v609, %v840
    %v842 = vpop.f32.mrf.mxu0
    %v843 = vadd.f32 %v613, %v842
    %v844 = vpop.f32.mrf.mxu0
    %v845 = vadd.f32 %v609, %v844
    %v846 = vpop.f32.mrf.mxu0
    %v847 = vadd.f32 %v613, %v846
    %848 = vdwg.mxu0
    %vm849 = vcmp.gt.f32.partialorder %v811, 0.0
    %vm850 = vcmp.gt.f32.partialorder %v813, 0.0
    %vm851 = vcmp.gt.f32.partialorder %v815, 0.0
    %vm852 = vcmp.gt.f32.partialorder %v817, 0.0
    %vm853 = vcmp.gt.f32.partialorder %v821, 0.0
    %vm854 = vcmp.gt.f32.partialorder %v823, 0.0
    %vm855 = vcmp.gt.f32.partialorder %v825, 0.0
    %vm856 = vcmp.gt.f32.partialorder %v827, 0.0
    %vm857 = vcmp.gt.f32.partialorder %v831, 0.0
    %vm858 = vcmp.gt.f32.partialorder %v833, 0.0
    %vm859 = vcmp.gt.f32.partialorder %v835, 0.0
    %vm860 = vcmp.gt.f32.partialorder %v837, 0.0
    %vm861 = vcmp.gt.f32.partialorder %v841, 0.0
    %vm862 = vcmp.gt.f32.partialorder %v843, 0.0
    %vm863 = vcmp.gt.f32.partialorder %v845, 0.0
    %vm864 = vcmp.gt.f32.partialorder %v847, 0.0
    %v865 = vmul.f32 %v811, 0.1
    %v866 = vmul.f32 %v813, 0.1
    %v867 = vmul.f32 %v815, 0.1
    %v868 = vmul.f32 %v817, 0.1
    %v869 = vmul.f32 %v821, 0.1
    %v870 = vmul.f32 %v823, 0.1
    %v871 = vmul.f32 %v825, 0.1
    %v872 = vmul.f32 %v827, 0.1
    %v873 = vmul.f32 %v831, 0.1
    %v874 = vmul.f32 %v833, 0.1
    %v875 = vmul.f32 %v835, 0.1
    %v876 = vmul.f32 %v837, 0.1
    %v877 = vmul.f32 %v841, 0.1
    %v878 = vmul.f32 %v843, 0.1
    %v879 = vmul.f32 %v845, 0.1
    %v880 = vmul.f32 %v847, 0.1
    %v881 = vsel %vm849, %v811, %v865
    %v882 = vsel %vm850, %v813, %v866
    %v883 = vsel %vm851, %v815, %v867
    %v884 = vsel %vm852, %v817, %v868
    %v885 = vsel %vm853, %v821, %v869
    %v886 = vsel %vm854, %v823, %v870
    %v887 = vsel %vm855, %v825, %v871
    %v888 = vsel %vm856, %v827, %v872
    %v889 = vsel %vm857, %v831, %v873
    %v890 = vsel %vm858, %v833, %v874
    %v891 = vsel %vm859, %v835, %v875
    %v892 = vsel %vm860, %v837, %v876
    %v893 = vsel %vm861, %v841, %v877
    %v894 = vsel %vm862, %v843, %v878
    %v895 = vsel %vm863, %v845, %v879
    %v896 = vsel %vm864, %v847, %v880
    %v897 = vpack.c.bf16 %v883, %v881
    %v898 = vpack.c.bf16 %v884, %v882
    %v899 = vpack.c.bf16 %v887, %v885
    %v900 = vpack.c.bf16 %v888, %v886
    %v901 = vpack.c.bf16 %v891, %v889
    %v902 = vpack.c.bf16 %v892, %v890
    %v903 = vpack.c.bf16 %v895, %v893
    %v904 = vpack.c.bf16 %v896, %v894
    %v905 = vld [vmem:[%s7] sm:$0xf]
    %v906 = vld [vmem:[%s7 + $0x4] sm:$0xf]
    %v907 = vld [vmem:[%s7 + $0x8] sm:$0xf]
    %v908 = vld [vmem:[%s7 + $0xc] sm:$0xf]
    %v909 = vld [vmem:[%s7 + $0x10] sm:$0xf]
    %v910 = vld [vmem:[%s7 + $0x14] sm:$0xf]
    %v911 = vld [vmem:[%s7 + $0x18] sm:$0xf]
    %v912 = vld [vmem:[%s7 + $0x1c] sm:$0xf]
    %v913 = vld [vmem:[%s7 + $0x20] sm:$0xf]
    %v914 = vld [vmem:[%s7 + $0x24] sm:$0xf]
    %v915 = vld [vmem:[%s7 + $0x28] sm:$0xf]
    %v916 = vld [vmem:[%s7 + $0x2c] sm:$0xf]
    %v917 = vld [vmem:[%s7 + $0x30] sm:$0xf]
    %v918 = vld [vmem:[%s7 + $0x34] sm:$0xf]
    %v919 = vld [vmem:[%s7 + $0x38] sm:$0xf]
    %v920 = vld [vmem:[%s7 + $0x3c] sm:$0xf]
    %v921 = vld [vmem:[%s7 + $0x40] sm:$0xf]
    %v922 = vld [vmem:[%s7 + $0x44] sm:$0xf]
    %v923 = vld [vmem:[%s7 + $0x48] sm:$0xf]
    %v924 = vld [vmem:[%s7 + $0x4c] sm:$0xf]
    %v925 = vld [vmem:[%s7 + $0x50] sm:$0xf]
    %v926 = vld [vmem:[%s7 + $0x54] sm:$0xf]
    %v927 = vld [vmem:[%s7 + $0x58] sm:$0xf]
    %v928 = vld [vmem:[%s7 + $0x5c] sm:$0xf]
    %v929 = vld [vmem:[%s7 + $0x60] sm:$0xf]
    %v930 = vld [vmem:[%s7 + $0x64] sm:$0xf]
    %v931 = vld [vmem:[%s7 + $0x68] sm:$0xf]
    %v932 = vld [vmem:[%s7 + $0x6c] sm:$0xf]
    %v933 = vld [vmem:[%s7 + $0x70] sm:$0xf]
    %v934 = vld [vmem:[%s7 + $0x74] sm:$0xf]
    %v935 = vld [vmem:[%s7 + $0x78] sm:$0xf]
    %v936 = vld [vmem:[%s7 + $0x7c] sm:$0xf]
    %v937 = vld [vmem:[%s8] sm:$0x1]
    %v939 = vlaneseq
    %v940 = vshrl.u32 %v939, 7
    %v941 = vsub.s32 0, %v940
    %v942 = vrot.slane %v937, %v941
    %v976 = vunpack.c.l.b16 %v905
    %v977 = vunpack.c.l.b16 %v906
    %v978 = vunpack.c.l.b16 %v907
    %v979 = vunpack.c.l.b16 %v908
    %v980 = vunpack.c.l.b16 %v909
    %v981 = vunpack.c.l.b16 %v910
    %v982 = vunpack.c.l.b16 %v911
    %v983 = vunpack.c.l.b16 %v912
    %v984 = vunpack.c.l.b16 %v913
    %v985 = vunpack.c.l.b16 %v914
    %v986 = vunpack.c.l.b16 %v915
    %v987 = vunpack.c.l.b16 %v916
    %v988 = vunpack.c.l.b16 %v917
    %v989 = vunpack.c.l.b16 %v918
    %v990 = vunpack.c.l.b16 %v919
    %v991 = vunpack.c.l.b16 %v920
    %v992 = vunpack.c.l.b16 %v921
    %v993 = vunpack.c.l.b16 %v922
    %v994 = vunpack.c.l.b16 %v923
    %v995 = vunpack.c.l.b16 %v924
    %v996 = vunpack.c.l.b16 %v925
    %v997 = vunpack.c.l.b16 %v926
    %v998 = vunpack.c.l.b16 %v927
    %v999 = vunpack.c.l.b16 %v928
    %v1000 = vunpack.c.l.b16 %v929
    %v1001 = vunpack.c.l.b16 %v930
    %v1002 = vunpack.c.l.b16 %v931
    %v1003 = vunpack.c.l.b16 %v932
    %v1004 = vunpack.c.l.b16 %v933
    %v1005 = vunpack.c.l.b16 %v934
    %v1006 = vunpack.c.l.b16 %v935
    %v1007 = vunpack.c.l.b16 %v936
    %v1008 = vpack.c.b16 %v977, %v976
    %v1009 = vpack.c.b16 %v979, %v978
    %v1010 = vpack.c.b16 %v981, %v980
    %v1011 = vpack.c.b16 %v983, %v982
    %v1012 = vpack.c.b16 %v985, %v984
    %v1013 = vpack.c.b16 %v987, %v986
    %v1014 = vpack.c.b16 %v989, %v988
    %v1015 = vpack.c.b16 %v991, %v990
    %v1016 = vpack.c.b16 %v993, %v992
    %v1017 = vpack.c.b16 %v995, %v994
    %v1018 = vpack.c.b16 %v997, %v996
    %v1019 = vpack.c.b16 %v999, %v998
    %v1020 = vpack.c.b16 %v1001, %v1000
    %v1021 = vpack.c.b16 %v1003, %v1002
    %v1022 = vpack.c.b16 %v1005, %v1004
    %v1023 = vpack.c.b16 %v1007, %v1006
    %1040 = vmatprep.subr.bf16.mxu0 0
    %1041 = vmatpush1.bf16.msra.mxu0 %v1015
    %1042 = vmatprep.subr.bf16.mxu0 0
    %1043 = vmatpush1.bf16.msra.mxu0 %v1014
    %1044 = vmatprep.subr.bf16.mxu0 0
    %1045 = vmatpush1.bf16.msra.mxu0 %v1013
    %1046 = vmatprep.subr.bf16.mxu0 0
    %1047 = vmatpush1.bf16.msra.mxu0 %v1012
    %1048 = vmatprep.subr.bf16.mxu0 0
    %1049 = vmatpush1.bf16.msra.mxu0 %v1011
    %1050 = vmatprep.subr.bf16.mxu0 0
    %1051 = vmatpush1.bf16.msra.mxu0 %v1010
    %1052 = vmatprep.subr.bf16.mxu0 0
    %1053 = vmatpush1.bf16.msra.mxu0 %v1009
    %1054 = vmatprep.subr.bf16.mxu0 0
    %1055 = vmatpush1.bf16.msra.mxu0 %v1008
    %1056 = vmatprep.subr.bf16.mxu0 0
    %1057 = vmatpush2.bf16.msra.mxu0 %v1023
    %1058 = vmatprep.subr.bf16.mxu0 0
    %1059 = vmatpush2.bf16.msra.mxu0 %v1022
    %1060 = vmatprep.subr.bf16.mxu0 0
    %1061 = vmatpush2.bf16.msra.mxu0 %v1021
    %1062 = vmatprep.subr.bf16.mxu0 0
    %1063 = vmatpush2.bf16.msra.mxu0 %v1020
    %1064 = vmatprep.subr.bf16.mxu0 0
    %1065 = vmatpush2.bf16.msra.mxu0 %v1019
    %1066 = vmatprep.subr.bf16.mxu0 0
    %1067 = vmatpush2.bf16.msra.mxu0 %v1018
    %1068 = vmatprep.subr.bf16.mxu0 0
    %1069 = vmatpush2.bf16.msra.mxu0 %v1017
    %1070 = vmatprep.subr.bf16.mxu0 0
    %1071 = vmatpush2.bf16.msra.mxu0 %v1016
    %1072 = vmatprep.mubr.bf16.mxu0 %v898
    %1073 = vmatmul.mubr.bf16.gmra.mxu0 %v897
    %v1074 = vpop.f32.mrf.mxu0
    %v1075 = vadd.f32 %v942, %v1074
    %v1076 = vpop.f32.mrf.mxu0
    %v1077 = vpop.f32.mrf.mxu0
    %v1078 = vadd.f32 %v942, %v1077
    %v1079 = vpop.f32.mrf.mxu0
    %1080 = vmatprep.mubr.bf16.mxu0 %v900
    %1081 = vmatmul.mubr.bf16.gmra.mxu0 %v899
    %v1082 = vpop.f32.mrf.mxu0
    %v1083 = vadd.f32 %v942, %v1082
    %v1084 = vpop.f32.mrf.mxu0
    %v1085 = vpop.f32.mrf.mxu0
    %v1086 = vadd.f32 %v942, %v1085
    %v1087 = vpop.f32.mrf.mxu0
    %1088 = vmatprep.mubr.bf16.mxu0 %v902
    %1089 = vmatmul.mubr.bf16.gmra.mxu0 %v901
    %v1090 = vpop.f32.mrf.mxu0
    %v1091 = vadd.f32 %v942, %v1090
    %v1092 = vpop.f32.mrf.mxu0
    %v1093 = vpop.f32.mrf.mxu0
    %v1094 = vadd.f32 %v942, %v1093
    %v1095 = vpop.f32.mrf.mxu0
    %1096 = vmatprep.mubr.bf16.mxu0 %v904
    %1097 = vmatmul.mubr.bf16.gmra.mxu0 %v903
    %v1098 = vpop.f32.mrf.mxu0
    %v1099 = vadd.f32 %v942, %v1098
    %v1100 = vpop.f32.mrf.mxu0
    %v1101 = vpop.f32.mrf.mxu0
    %v1102 = vadd.f32 %v942, %v1101
    %v1103 = vpop.f32.mrf.mxu0
    %1104 = vdwg.mxu0
    %vm1105 = vcmask 64512
    %1106 = vst.msk [vmem:[%s9] sm:$0xff] %vm1105, %v1075
    %1107 = vst.msk [vmem:[%s9 + $0x8] sm:$0xff] %vm1105, %v1078
    %1108 = vst.msk [vmem:[%s9 + $0x10] sm:$0xff] %vm1105, %v1083
    %1109 = vst.msk [vmem:[%s9 + $0x18] sm:$0xff] %vm1105, %v1086
    %1110 = vst.msk [vmem:[%s9 + $0x20] sm:$0xff] %vm1105, %v1091
    %1111 = vst.msk [vmem:[%s9 + $0x28] sm:$0xff] %vm1105, %v1094
    %1112 = vst.msk [vmem:[%s9 + $0x30] sm:$0xff] %vm1105, %v1099
    %1113 = vst.msk [vmem:[%s9 + $0x38] sm:$0xff] %vm1105, %v1102
    // Predicated region
    $region46: #{_cond_noise_mlp_impl.1} parent=1 // pred_check
      _
    $region47: #{_cond_noise_mlp_impl.1} parent=1 // pred_check_branch
      %1115 = sbr.rel (0) target = $region49
    $region48: #{_cond_noise_mlp_impl.1} parent=1 // pred_region
      _
    $region49: #{_cond_noise_mlp_impl.1} parent=1 // pred_fallthru
      _
    // Predicated region
    $region50: #{_cond_noise_mlp_impl.1} parent=1 // pred_check
      _
    $region51: #{_cond_noise_mlp_impl.1} parent=1 // pred_check_branch
      %1117 = sbr.rel (0) target = $region53
    $region52: #{_cond_noise_mlp_impl.1} parent=1 // pred_region
      _
    $region53: #{_cond_noise_mlp_impl.1} parent=1 // pred_fallthru
      _
    %1118 = vsyncpa [#allocation3], 1
    %1119 = vsyncpa [#allocation5], 1

</llo_original>
